<compile_context>
chip_gen: v7x
topology: tpu7x:2x2x1
jax: 0.10.0
libtpu: 0.0.40
codegen_flags: <defaults>
</compile_context>

<pallas_src>
import functools

import jax
import jax.numpy as jnp
from jax import lax
from jax.experimental import pallas as pl
from jax.experimental.pallas import tpu as pltpu


def _ls_ce_kernel(x_ref, tgt_ref, part_ref, *, n_classes, n_valid):
    """One row-tile: emit (8,128) slab with [0,0]=sum(-sum_c logp), [0,1]=sum(-logp[t])."""
    x = x_ref[...].astype(jnp.float32)            # (TN, C) upcast inside kernel
    t = tgt_ref[...]                              # (TN, 1) int32

    # Stable log-softmax statistics; `x` is dead right after s = x - m.
    m = jnp.max(x, axis=-1, keepdims=True)        # (TN, 1)
    s = x - m                                     # (TN, C)
    lse = jnp.log(jnp.sum(jnp.exp(s), axis=-1, keepdims=True))   # (TN, 1)

    # sum_c logp = sum_c (x - m - lse) = sum_c s - C * lse
    row_sum_logp = jnp.sum(s, axis=-1, keepdims=True) - n_classes * lse   # (TN, 1)

    # logp[target] = s[target] - lse  (gather via one-hot masked sum on s)
    col = lax.broadcasted_iota(jnp.int32, s.shape, 1)
    s_t = jnp.sum(jnp.where(col == t, s, 0.0), axis=-1, keepdims=True)    # (TN, 1)
    logp_t = s_t - lse                                                    # (TN, 1)

    # Row validity from the GLOBAL row index (logits are not padded in HBM; the
    # last block reads garbage rows that must be zeroed here).
    row_tile = s.shape[0]
    row = pl.program_id(0) * row_tile + lax.broadcasted_iota(
        jnp.int32, (row_tile, 1), 0)
    valid = row < n_valid

    sum_smooth = jnp.sum(jnp.where(valid, -row_sum_logp, 0.0))
    sum_nll = jnp.sum(jnp.where(valid, -logp_t, 0.0))

    lane = lax.broadcasted_iota(jnp.int32, (8, 128), 1)
    sub = lax.broadcasted_iota(jnp.int32, (8, 128), 0)
    slab = jnp.where((sub == 0) & (lane == 0), sum_smooth,
                     jnp.where((sub == 0) & (lane == 1), sum_nll, 0.0))
    part_ref[...] = slab[None, :, :]


def _vmem_capacity_bytes():
    try:
        return int(pltpu.get_tpu_info().vmem_capacity_bytes)
    except Exception:
        return 64 << 20   # conservative fallback (v7x per-TensorCore VMEM)


def _per_row_bytes(c, itemsize):
    cpad = max(-(-c // 128) * 128, 128)
    # double-buffered native x row + lane-padded (1->128) int32 target row
    # + ~3 live full-width f32 temporaries inside the kernel body.
    return 2 * (c * itemsize + 128 * 4) + 3 * cpad * 4


def _pick_row_tile(n, c, itemsize, vmem_bytes):
    """Largest sublane-packed row tile fitting a per-generation VMEM budget."""
    sub = max(8, 32 // itemsize)                  # 8 f32 / 16 bf16 / 32 int8
    n_up = -(-n // sub) * sub
    budget = vmem_bytes // 3                      # leave room for pipelining + scratch
    rt = max(budget // _per_row_bytes(c, itemsize), sub)
    # Keep num_tiles >= 2 so the 'parallel' grid axis shards across v7x's 2 TCs.
    half = -(-((n_up + 1) // 2) // sub) * sub
    rt = min(rt, half, 16384, n_up)
    rt = max(sub, (rt // sub) * sub)
    return int(rt)


def _vmem_limit(row_tile, c, itemsize, vmem_bytes):
    est = _per_row_bytes(c, itemsize) * row_tile + 2 * (8 * 128 * 4) + (8 << 20)
    if vmem_bytes >= (96 << 20):
        cap = (vmem_bytes * 3) // 4               # ~96 MiB on v5e/v6e
    else:
        cap = (vmem_bytes * 3) // 5               # ~38 MiB on v7x
    return int(min(max(est, 32 << 20), cap))


def label_smoothing_cross_entropy(output, target, eps=0.1, reduction="mean"):
    """Pallas implementation of LabelSmoothingCrossEntropy.forward.

    output: (N, C) float array, target: (N,) int array with values in [0, C).
    """
    assert reduction == "mean"  # TODO(synk): 'sum'/'none' not implemented
    n, c = output.shape
    itemsize = jnp.dtype(output.dtype).itemsize
    vmem_bytes = _vmem_capacity_bytes()
    row_tile = _pick_row_tile(n, c, itemsize, vmem_bytes)
    num_tiles = -(-n // row_tile)
    n_padded = num_tiles * row_tile

    # Only the tiny (N,) target array is padded; the logits are NOT copied /
    # padded.  The last logits block reads past the end of `output`; those
    # garbage rows are masked out inside the kernel via the global row index.
    tgt = target.astype(jnp.int32)
    if n_padded != n:
        tgt = jnp.pad(tgt, ((0, n_padded - n),), constant_values=-1)
    tgt2d = tgt.reshape(n_padded, 1)

    vmem_limit = _vmem_limit(row_tile, c, itemsize, vmem_bytes)
    kernel = functools.partial(_ls_ce_kernel, n_classes=float(c), n_valid=int(n))

    partials = pl.pallas_call(
        kernel,
        out_shape=jax.ShapeDtypeStruct((num_tiles, 8, 128), jnp.float32),
        grid_spec=pltpu.PrefetchScalarGridSpec(
            num_scalar_prefetch=0,
            grid=(num_tiles,),
            in_specs=[
                pl.BlockSpec((row_tile, c), lambda i: (i, 0)),
                pl.BlockSpec((row_tile, 1), lambda i: (i, 0)),
            ],
            out_specs=pl.BlockSpec((1, 8, 128), lambda i: (i, 0, 0)),
        ),
        compiler_params=pltpu.CompilerParams(
            dimension_semantics=("parallel",),
            vmem_limit_bytes=vmem_limit),
    )(output, tgt2d)

    totals = jnp.sum(partials, axis=(0, 1))          # (128,)
    smooth_mean = totals[0] / n                      # mean of -sum_c logp
    nll_mean = totals[1] / n                         # mean NLL
    return (1.0 - eps) * nll_mean + eps * (smooth_mean / c)


def _reference(output, target, eps=0.1):
    c = output.shape[-1]
    logp = jax.nn.log_softmax(output.astype(jnp.float32), axis=-1)
    loss = jnp.mean(-jnp.sum(logp, axis=-1))
    nll = jnp.mean(-jnp.take_along_axis(logp, target[:, None], axis=-1)[:, 0])
    return (1.0 - eps) * nll + eps * (loss / c)


if __name__ == "__main__":
    key = jax.random.PRNGKey(0)
    k1, k2, k3, k4, k5, k6 = jax.random.split(key, 6)

    # Primary small test (N divides the row tile; 2 tiles on the parallel axis).
    N, C = 16, 32
    logits = jax.random.normal(k1, (N, C), dtype=jnp.float32)
    target = jax.random.randint(k2, (N,), 0, C, dtype=jnp.int32)
    res = jax.block_until_ready(label_smoothing_cross_entropy(logits, target, eps=0.1))
    ref = _reference(logits, target, eps=0.1)
    assert jnp.allclose(res, ref, atol=1e-5, rtol=1e-5), (res, ref)

    # Ragged N exercises the no-pad OOB-read + row-index masking path.
    N2, C2 = 13, 32
    logits2 = jax.random.normal(k3, (N2, C2), dtype=jnp.float32)
    target2 = jax.random.randint(k4, (N2,), 0, C2, dtype=jnp.int32)
    res2 = jax.block_until_ready(label_smoothing_cross_entropy(logits2, target2, eps=0.1))
    ref2 = _reference(logits2, target2, eps=0.1)
    assert jnp.allclose(res2, ref2, atol=1e-5, rtol=1e-5), (res2, ref2)

    # bf16 logits + C that is not a multiple of 128 (in-kernel upcast, lane masking).
    N3, C3 = 24, 160
    logits3 = jax.random.normal(k5, (N3, C3), dtype=jnp.float32).astype(jnp.bfloat16)
    target3 = jax.random.randint(k6, (N3,), 0, C3, dtype=jnp.int32)
    res3 = jax.block_until_ready(label_smoothing_cross_entropy(logits3, target3, eps=0.1))
    ref3 = _reference(logits3, target3, eps=0.1)
    assert jnp.allclose(res3, ref3, atol=2e-3, rtol=2e-3), (res3, ref3)

    print("KERNEL_OK")
</pallas_src>

<mosaic_0001>
module attributes {stable_mosaic.version = 11 : i64} {
  func.func @_ls_ce_kernel(%arg0: i32, %arg1: memref<8x32xf32, #tpu.memory_space<vmem>>, %arg2: memref<8x1xi32, #tpu.memory_space<vmem>>, %arg3: memref<1x8x128xf32, #tpu.memory_space<vmem>>) attributes {dimension_semantics = [#tpu.dimension_semantics<parallel>], iteration_bounds = array<i64: 2>, scalar_prefetch = 0 : i64, scratch_operands = 0 : i64, tpu.core_type = #tpu.core_type<tc>, window_params = [{transform_indices = @transform_0, window_bounds = array<i64: 8, 32>}, {transform_indices = @transform_1, window_bounds = array<i64: 8, 1>}, {transform_indices = @transform_2, window_bounds = array<i64: 1, 8, 128>}]} {
    %c0 = arith.constant 0 : index
    %c0_0 = arith.constant 0 : index
    %0 = vector.load %arg1[%c0, %c0_0] : memref<8x32xf32, #tpu.memory_space<vmem>>, vector<8x32xf32>
    %c0_1 = arith.constant 0 : index
    %c0_2 = arith.constant 0 : index
    %1 = vector.load %arg2[%c0_1, %c0_2] : memref<8x1xi32, #tpu.memory_space<vmem>>, vector<8x1xi32>
    %cst = arith.constant dense<0xFF800000> : vector<8xf32>
    %2 = vector.multi_reduction <maximumf>, %0, %cst [1] : vector<8x32xf32> to vector<8xf32>
    %3 = vector.shape_cast %2 : vector<8xf32> to vector<8x1xf32>
    %4 = vector.broadcast %3 : vector<8x1xf32> to vector<8x32xf32>
    %5 = arith.subf %0, %4 : vector<8x32xf32>
    %6 = math.exp %5 : vector<8x32xf32>
    %cst_3 = arith.constant dense<0.000000e+00> : vector<8xf32>
    %7 = vector.multi_reduction <add>, %6, %cst_3 [1] : vector<8x32xf32> to vector<8xf32>
    %8 = vector.shape_cast %7 : vector<8xf32> to vector<8x1xf32>
    %9 = math.log %8 : vector<8x1xf32>
    %cst_4 = arith.constant dense<0.000000e+00> : vector<8xf32>
    %10 = vector.multi_reduction <add>, %5, %cst_4 [1] : vector<8x32xf32> to vector<8xf32>
    %11 = vector.shape_cast %10 : vector<8xf32> to vector<8x1xf32>
    %cst_5 = arith.constant 3.200000e+01 : f32
    %12 = vector.broadcast %cst_5 : f32 to vector<8x1xf32>
    %13 = arith.mulf %12, %9 : vector<8x1xf32>
    %14 = arith.subf %11, %13 : vector<8x1xf32>
    %15 = tpu.iota {dimensions = array<i32: 1>} : vector<8x32xi32>
    %16 = vector.broadcast %1 : vector<8x1xi32> to vector<8x32xi32>
    %17 = arith.cmpi eq, %15, %16 : vector<8x32xi32>
    %cst_6 = arith.constant 0.000000e+00 : f32
    %18 = vector.broadcast %cst_6 : f32 to vector<8x32xf32>
    %19 = arith.select %17, %5, %18 : vector<8x32xi1>, vector<8x32xf32>
    %cst_7 = arith.constant dense<0.000000e+00> : vector<8xf32>
    %20 = vector.multi_reduction <add>, %19, %cst_7 [1] : vector<8x32xf32> to vector<8xf32>
    %21 = vector.shape_cast %20 : vector<8xf32> to vector<8x1xf32>
    %22 = arith.subf %21, %9 : vector<8x1xf32>
    %c8_i32 = arith.constant 8 : i32
    %23 = arith.muli %arg0, %c8_i32 : i32
    %24 = tpu.iota {dimensions = array<i32: 0>} : vector<8x1xi32>
    %25 = vector.broadcast %23 : i32 to vector<8x1xi32>
    %26 = arith.addi %25, %24 : vector<8x1xi32>
    %c16_i32 = arith.constant 16 : i32
    %27 = vector.broadcast %c16_i32 : i32 to vector<8x1xi32>
    %28 = arith.cmpi slt, %26, %27 : vector<8x1xi32>
    %cst_8 = arith.constant 0.000000e+00 : f32
    %29 = vector.broadcast %cst_8 : f32 to vector<8x1xf32>
    %30 = arith.subf %29, %14 : vector<8x1xf32>
    %cst_9 = arith.constant 0.000000e+00 : f32
    %31 = vector.broadcast %cst_9 : f32 to vector<8x1xf32>
    %32 = arith.select %28, %30, %31 : vector<8x1xi1>, vector<8x1xf32>
    %33 = vector.shape_cast %32 : vector<8x1xf32> to vector<1x8x1xf32>
    %cst_10 = arith.constant dense<0.000000e+00> : vector<1xf32>
    %34 = vector.multi_reduction <add>, %33, %cst_10 [1, 2] : vector<1x8x1xf32> to vector<1xf32>
    %35 = vector.shape_cast %34 : vector<1xf32> to vector<1x1x1xf32>
    %36 = vector.extract %35[0, 0, 0] : f32 from vector<1x1x1xf32>
    %cst_11 = arith.constant 0.000000e+00 : f32
    %37 = vector.broadcast %cst_11 : f32 to vector<8x1xf32>
    %38 = arith.subf %37, %22 : vector<8x1xf32>
    %cst_12 = arith.constant 0.000000e+00 : f32
    %39 = vector.broadcast %cst_12 : f32 to vector<8x1xf32>
    %40 = arith.select %28, %38, %39 : vector<8x1xi1>, vector<8x1xf32>
    %41 = vector.shape_cast %40 : vector<8x1xf32> to vector<1x8x1xf32>
    %cst_13 = arith.constant dense<0.000000e+00> : vector<1xf32>
    %42 = vector.multi_reduction <add>, %41, %cst_13 [1, 2] : vector<1x8x1xf32> to vector<1xf32>
    %43 = vector.shape_cast %42 : vector<1xf32> to vector<1x1x1xf32>
    %44 = vector.extract %43[0, 0, 0] : f32 from vector<1x1x1xf32>
    %45 = tpu.iota {dimensions = array<i32: 1>} : vector<8x128xi32>
    %46 = tpu.iota {dimensions = array<i32: 0>} : vector<8x128xi32>
    %c0_i32 = arith.constant 0 : i32
    %47 = vector.broadcast %c0_i32 : i32 to vector<8x128xi32>
    %48 = arith.cmpi eq, %46, %47 : vector<8x128xi32>
    %c0_i32_14 = arith.constant 0 : i32
    %49 = vector.broadcast %c0_i32_14 : i32 to vector<8x128xi32>
    %50 = arith.cmpi eq, %45, %49 : vector<8x128xi32>
    %51 = arith.andi %48, %50 : vector<8x128xi1>
    %c0_i32_15 = arith.constant 0 : i32
    %52 = vector.broadcast %c0_i32_15 : i32 to vector<8x128xi32>
    %53 = arith.cmpi eq, %46, %52 : vector<8x128xi32>
    %c1_i32 = arith.constant 1 : i32
    %54 = vector.broadcast %c1_i32 : i32 to vector<8x128xi32>
    %55 = arith.cmpi eq, %45, %54 : vector<8x128xi32>
    %56 = arith.andi %53, %55 : vector<8x128xi1>
    %cst_16 = arith.constant 0.000000e+00 : f32
    %57 = vector.broadcast %44 : f32 to vector<8x128xf32>
    %58 = vector.broadcast %cst_16 : f32 to vector<8x128xf32>
    %59 = arith.select %56, %57, %58 : vector<8x128xi1>, vector<8x128xf32>
    %60 = vector.broadcast %36 : f32 to vector<8x128xf32>
    %61 = arith.select %51, %60, %59 : vector<8x128xi1>, vector<8x128xf32>
    %62 = vector.shape_cast %61 : vector<8x128xf32> to vector<1x8x128xf32>
    %c0_17 = arith.constant 0 : index
    %c0_18 = arith.constant 0 : index
    %c0_19 = arith.constant 0 : index
    %63 = vector.load %arg3[%c0_17, %c0_18, %c0_19] : memref<1x8x128xf32, #tpu.memory_space<vmem>>, vector<1x8x128xf32>
    tpu.vector_store %arg3[%c0_17, %c0_18, %c0_19], %62 {strides = array<i32>} : memref<1x8x128xf32, #tpu.memory_space<vmem>>, vector<1x8x128xf32>,
    return
  }
  func.func @transform_0(%arg0: i32) -> (i32, i32) {
    %c0_i32 = arith.constant 0 : i32
    %c0_i32_0 = arith.constant 0 : i32
    return %arg0, %c0_i32 : i32, i32
  }
  func.func @transform_1(%arg0: i32) -> (i32, i32) {
    %c0_i32 = arith.constant 0 : i32
    %c0_i32_0 = arith.constant 0 : i32
    return %arg0, %c0_i32 : i32, i32
  }
  func.func @transform_2(%arg0: i32) -> (i32, i32, i32) {
    %c0_i32 = arith.constant 0 : i32
    %c0_i32_0 = arith.constant 0 : i32
    %c0_i32_1 = arith.constant 0 : i32
    return %arg0, %c0_i32, %c0_i32_0 : i32, i32, i32
  }
}

</mosaic_0001>

<llo_original>
// kernel: tpu_custom_call.1
$region0: #{tpu_custom_call.1}
  #allocation0 [shape = 'u32[]', space=smem, size = 0x4, offset = 0x4, fixed_abs, tag = 'smem constant byte address 0x4 - core index']
  #allocation1 [shape = 'u32[144,128]{1,0:T(1,128)}', space=vmem, size = 0x12000, scoped, tag = 'internal scratch']
  %s0 = inlined_call_operand.vmem [shape: f32[16,32], index: 0, kind: input, shape index: {}]
  %s1 = inlined_call_operand.vmem [shape: s32[16,1], index: 1, kind: input, shape index: {}]
  %s2 = inlined_call_operand.hbm [shape: f32[2,8,128], index: 2, kind: output, shape index: {}]
  %s3 = sld [smem:[#allocation0]]
  $region41: #{tpu_custom_call.1} parent=0
    _
  %s5 = ssub.s32 1, %s3
  %s6 = scalar_select 0, %s5, %s3
  $region1: #{tpu_custom_call.1} parent=0
    #allocation2 [shape = 'u8[8192]{0}', space=vmem, size = 0x2000, scoped, tag = 'output window, operand 0']
    #allocation3 [shape = 's32[2]{0}', space=sflag, size = 0x8, scoped, tag = 'scoped memory for tpu_custom_call.1']
    %7 = vsyncpa [#allocation3], 0
    %s8 = scalar_lea.sflag [#allocation3], 1
    %9 = vsyncpa %s8, 0
    loop: start=0, step=1, limit=4
    $region2: #{tpu_custom_call.1} parent=1 // loop_pre_header
      _
    $region3: #{tpu_custom_call.1} parent=1 // loop_header
      %s11 = sphi 0, %s15
      %p12 = scmp.ge.s32.totalorder %s11, 4
      %s21 = sphi 0, %s23
      %s24 = sphi 0, %s21
      %s25 = sphi 0, %s24
      %s41 = sphi 0, %s25
      %s47 = sphi 0, %s49
      %s50 = sphi 0, %s47
      %s51 = sphi 0, %s50
      %s67 = sphi 0, %s51
      %s73 = sphi 0, %s75
      %s76 = sphi 0, %s73
      %s77 = sphi 0, %s76
      %s93 = sphi 0, %s77
    $region4: #{tpu_custom_call.1} parent=1 // loop_header_branch
      %14 = sbr.rel (%p12) target = $region8
    $region5: #{tpu_custom_call.1} parent=1 // loop_body
      %s16 = ssub.s32 %s11, 1
      %s17 = ssub.s32 %s11, 2
      %s18 = sadd.s32 %s11, 1
      %s19 = ssub.s32 %s11, %s18
      %p20 = scmp.eq.s32.totalorder %s19, 0
      %s22 = sadd.s32 %s21, 1
      %s23 = scalar_select %p20, %s21, %s22
      %p26 = pneg %p20
      %p27 = scmp.eq.s32.totalorder %s11, 1
      %p28 = por %p26, %p27
      %p29 = scmp.ne.s32.totalorder %s21, %s24
      %p30 = scmp.eq.s32.totalorder %s11, 0
      %p31 = por %p29, %p30
      %p32 = scmp.ne.s32.totalorder %s21, %s24
      %p33 = scmp.eq.s32.totalorder %s16, 1
      %p34 = por %p32, %p33
      %p35 = scmp.ne.s32.totalorder %s24, %s25
      %p36 = scmp.eq.s32.totalorder %s16, 0
      %p37 = por %p35, %p36
      %p38 = scmp.ne.s32.totalorder %s24, %s25
      %p39 = scmp.eq.s32.totalorder %s17, 1
      %p40 = por %p38, %p39
      %p42 = scmp.ne.s32.totalorder %s25, %s41
      %p43 = scmp.eq.s32.totalorder %s17, 0
      %p44 = por %p42, %p43
      %s45 = ssub.s32 %s11, %s18
      %p46 = scmp.eq.s32.totalorder %s45, 0
      %s48 = sadd.s32 %s47, 1
      %s49 = scalar_select %p46, %s47, %s48
      %p52 = pneg %p46
      %p53 = scmp.eq.s32.totalorder %s11, 1
      %p54 = por %p52, %p53
      %p55 = scmp.ne.s32.totalorder %s47, %s50
      %p56 = scmp.eq.s32.totalorder %s11, 0
      %p57 = por %p55, %p56
      %p58 = scmp.ne.s32.totalorder %s47, %s50
      %p59 = scmp.eq.s32.totalorder %s16, 1
      %p60 = por %p58, %p59
      %p61 = scmp.ne.s32.totalorder %s50, %s51
      %p62 = scmp.eq.s32.totalorder %s16, 0
      %p63 = por %p61, %p62
      %p64 = scmp.ne.s32.totalorder %s50, %s51
      %p65 = scmp.eq.s32.totalorder %s17, 1
      %p66 = por %p64, %p65
      %p68 = scmp.ne.s32.totalorder %s51, %s67
      %p69 = scmp.eq.s32.totalorder %s17, 0
      %p70 = por %p68, %p69
      %s71 = ssub.s32 %s11, %s18
      %p72 = scmp.eq.s32.totalorder %s71, 0
      %s74 = sadd.s32 %s73, 1
      %s75 = scalar_select %p72, %s73, %s74
      %p78 = pneg %p72
      %p79 = scmp.eq.s32.totalorder %s11, 1
      %p80 = por %p78, %p79
      %p81 = scmp.ne.s32.totalorder %s73, %s76
      %p82 = scmp.eq.s32.totalorder %s11, 0
      %p83 = por %p81, %p82
      %p84 = scmp.ne.s32.totalorder %s73, %s76
      %p85 = scmp.eq.s32.totalorder %s16, 1
      %p86 = por %p84, %p85
      %p87 = scmp.ne.s32.totalorder %s76, %s77
      %p88 = scmp.eq.s32.totalorder %s16, 0
      %p89 = por %p87, %p88
      %p90 = scmp.ne.s32.totalorder %s76, %s77
      %p91 = scmp.eq.s32.totalorder %s17, 1
      %p92 = por %p90, %p91
      %p94 = scmp.ne.s32.totalorder %s77, %s93
      %p95 = scmp.eq.s32.totalorder %s17, 0
      %p96 = por %p94, %p95
      %p97 = scmp.le.s32.totalorder 1, %s11
      %p98 = scmp.lt.s32.totalorder %s11, 3
      %p99 = pnand %p97, %p98
      %p100 = pneg %p99
      // Predicated region
      $region9: #{tpu_custom_call.1} parent=5 // pred_check
        _
      $region10: #{tpu_custom_call.1} parent=5 // pred_check_branch
        %102 = sbr.rel (%p99) target = $region12
      $region11: #{tpu_custom_call.1} parent=5 // pred_region
        %s103 = ssub.s32 %s11, 1
      $region12: #{tpu_custom_call.1} parent=5 // pred_fallthru
        _
      %p104 = scmp.lt.s32.totalorder %s11, 2
      // Predicated region
      $region13: #{tpu_custom_call.1} parent=5 // pred_check
        %p105 = pneg %p104
      $region14: #{tpu_custom_call.1} parent=5 // pred_check_branch
        %107 = sbr.rel (%p105) target = $region16
      $region15: #{tpu_custom_call.1} parent=5 // pred_region
        // Predicated region
        $region17: #{tpu_custom_call.1} parent=15 // pred_check
          %p108 = pneg %p31
        $region18: #{tpu_custom_call.1} parent=15 // pred_check_branch
          %110 = sbr.rel (%p108) target = $region20
        $region19: #{tpu_custom_call.1} parent=15 // pred_region
          %p111 = scmp.lt.s32.totalorder %s11, 1
          %s112 = scalar_select %p111, %s11, 1
          %s113 = smul.addr %s112, 8
          %s114 = scalar_lea.vmem %s0, %s113
        $region20: #{tpu_custom_call.1} parent=15 // pred_fallthru
          _
        // Predicated region
        $region21: #{tpu_custom_call.1} parent=15 // pred_check
          %p115 = pneg %p57
        $region22: #{tpu_custom_call.1} parent=15 // pred_check_branch
          %117 = sbr.rel (%p115) target = $region24
        $region23: #{tpu_custom_call.1} parent=15 // pred_region
          %p118 = scmp.lt.s32.totalorder %s11, 1
          %s119 = scalar_select %p118, %s11, 1
          %s120 = smul.addr %s119, 8
          %s121 = scalar_lea.vmem %s1, %s120
        $region24: #{tpu_custom_call.1} parent=15 // pred_fallthru
          _
      $region16: #{tpu_custom_call.1} parent=5 // pred_fallthru
        _
      %p122 = scmp.le.s32.totalorder 1, %s11
      %p123 = scmp.lt.s32.totalorder %s11, 3
      %p124 = pnand %p122, %p123
      %p125 = pneg %p124
      // Predicated region
      $region25: #{tpu_custom_call.1} parent=5 // pred_check
        _
      $region26: #{tpu_custom_call.1} parent=5 // pred_check_branch
        %127 = sbr.rel (%p124) target = $region28
      $region27: #{tpu_custom_call.1} parent=5 // pred_region
        %s128 = ssub.s32 %s11, 1
        %p129 = scmp.lt.s32.totalorder %s16, 1
        %s130 = scalar_select %p129, %s16, 1
        %s131 = smul.addr %s130, 8
        %s132 = scalar_lea.vmem %s0, %s131
        %p133 = pneg %p37
        %p134 = pneg %p34
        %p135 = scmp.lt.s32.totalorder %s16, 1
        %s136 = scalar_select %p135, %s16, 1
        %s137 = smul.addr %s136, 8
        %s138 = scalar_lea.vmem %s1, %s137
        %p139 = pneg %p63
        %p140 = pneg %p60
        %p141 = pneg %p89
        %p142 = pneg %p86
        %s143 = sand.u32 %s76, 1
        %s144 = scalar_lea.sflag [#allocation3], %s143
        %s145 = sand.u32 %s76, 1
        %s146 = smul.addr %s145, 8
        %s147 = scalar_lea.vmem [#allocation2], %s146
        %p148 = scmp.lt.s32.totalorder %s16, 1
        %s149 = scalar_select %p148, %s16, 1
        %s150 = smul.addr %s149, 8
        %s151 = scalar_lea.vmem %s0, %s150
        %p152 = scmp.lt.s32.totalorder %s16, 1
        %s153 = scalar_select %p152, %s16, 1
        %s154 = smul.addr %s153, 8
        %s155 = scalar_lea.vmem %s1, %s154
        %v156 = vld [vmem:[%s151] sm:$0xff]
        %v157 = vld [vmem:[%s155] sm:$0xff]
        %vm158 = vcmask 261120
        %v159 = vsel %vm158, %v156, -inf
        %160 = vmax.xlane.f32.xlu0 %v159
        %v161 = vpop.xlane.xlu0 %160
        %v162 = vsub.f32 %v156, %v161
        %v163 = vmul.f32 %v162, 1.442695
        %v164 = vpow.pop %v163
        %v165 = vsel %vm158, %v164, 0.0
        %166 = vadd.xlane.f32.xlu0 %v165
        %v167 = vpop.xlane.xlu0 %166
        %v168 = vlog2.pop %v167
        %v169 = vmul.f32 %v168, 0.6931472
        %v170 = vsel %vm158, %v162, 0.0
        %171 = vadd.xlane.f32.xlu0 %v170
        %v172 = vpop.xlane.xlu0 %171
        %v173 = vmul.f32 %v169, 32.0
        %v174 = vsub.f32 %v172, %v173
        %v175 = vlaneseq
        %v176 = vand.u32 %v175, 127
        %177 = vset.pattern.permute.xlu0 0
        %178 = vperm.xlu0 %177, %v157
        %v179 = vpop.permute.xlu0 %178
        %vm180 = vcmp.eq.s32.totalorder %v176, %v179
        %v181 = vsel %vm180, %v162, 0.0
        %v182 = vsel %vm158, %v181, 0.0
        %183 = vadd.xlane.f32.xlu0 %v182
        %v184 = vpop.xlane.xlu0 %183
        %v185 = vsub.f32 %v184, %v169
        %s186 = smul.u32 %s16, 8
        %v187 = vlaneseq
        %v188 = vshrl.u32 %v187, 7
        %v189 = vstv %s186
        %v190 = vadd.s32 %v189, %v188
        %vm191 = vcmp.lt.s32.totalorder %v190, 16
        %v192 = vsub.f32 0.0, %v174
        %v193 = vsel %vm191, %v192, 0.0
        %vm194 = vcmask 7168
        %v195 = vsel %vm194, %v193, 0.0
        %196 = vadd.xlane.f32.xlu0 %v195
        %v197 = vpop.xlane.xlu0 %196
        %v198 = vrot.slane %v197, 4
        %v199 = vadd.f32 %v197, %v198
        %v200 = vrot.slane %v199, 2
        %v201 = vadd.f32 %v199, %v200
        %v202 = vrot.slane %v201, 1
        %v203 = vadd.f32 %v201, %v202
        %s204 = vtos %v203
        %v205 = vsub.f32 0.0, %v185
        %v206 = vsel %vm191, %v205, 0.0
        %v207 = vsel %vm194, %v206, 0.0
        %208 = vadd.xlane.f32.xlu0 %v207
        %v209 = vpop.xlane.xlu0 %208
        %v210 = vrot.slane %v209, 4
        %v211 = vadd.f32 %v209, %v210
        %v212 = vrot.slane %v211, 2
        %v213 = vadd.f32 %v211, %v212
        %v214 = vrot.slane %v213, 1
        %v215 = vadd.f32 %v213, %v214
        %s216 = vtos %v215
        %vm217 = vcmp.eq.s32.totalorder %v188, 0
        %vm218 = vcmp.eq.s32.totalorder %v176, 0
        %vm219 = vmand %vm217, %vm218
        %vm220 = vcmp.eq.s32.totalorder %v176, 1
        %vm221 = vmand %vm217, %vm220
        %v222 = vstv %s216
        %v223 = vsel %vm221, %v222, 0.0
        %v224 = vstv %s204
        %v225 = vsel %vm219, %v224, %v223
        %226 = vst [vmem:[%s147] sm:$0xff] %v225
        %s227 = sand.u32 %s76, 1
        %s228 = scalar_lea.sflag [#allocation3], %s227
        %s229 = sand.u32 %s76, 1
        %s230 = smul.addr %s229, 8
        %s231 = scalar_lea.vmem [#allocation2], %s230
        // Predicated region
        $region29: #{tpu_custom_call.1} parent=27 // pred_check
          %p232 = pneg %p86
        $region30: #{tpu_custom_call.1} parent=27 // pred_check_branch
          %234 = sbr.rel (%p232) target = $region32
        $region31: #{tpu_custom_call.1} parent=27 // pred_region
          %s236 = ssub.s32 128, 128
          %237 = vsyncadd %s228, %s236
          %s238 = smul.addr %s16, 128
          %s239 = scalar_lea.hbm %s2, %s238
          %s241 = sshll.u32 %s231, 4
          %s242 = int_to_ptr.vmem [resolvable:$true] %s241
          %244 = dma.vmem_to_hbm [thread:$0]  %s242, 128, %s239, %s228
        $region32: #{tpu_custom_call.1} parent=27 // pred_fallthru
          _
      $region28: #{tpu_custom_call.1} parent=5 // pred_fallthru
        _
      %p245 = scmp.le.s32.totalorder 2, %s11
      // Predicated region
      $region33: #{tpu_custom_call.1} parent=5 // pred_check
        %p246 = pneg %p245
      $region34: #{tpu_custom_call.1} parent=5 // pred_check_branch
        %248 = sbr.rel (%p246) target = $region36
      $region35: #{tpu_custom_call.1} parent=5 // pred_region
        %s249 = ssub.s32 %s11, 2
        // Predicated region
        $region37: #{tpu_custom_call.1} parent=35 // pred_check
          %p250 = pneg %p92
        $region38: #{tpu_custom_call.1} parent=35 // pred_check_branch
          %252 = sbr.rel (%p250) target = $region40
        $region39: #{tpu_custom_call.1} parent=35 // pred_region
          %s253 = sand.u32 %s77, 1
          %s254 = scalar_lea.sflag [#allocation3], %s253
          %s255 = sand.u32 %s77, 1
          %s256 = smul.addr %s255, 8
          %s257 = scalar_lea.vmem [#allocation2], %s256
          %258 = dma.done %s254, 128
        $region40: #{tpu_custom_call.1} parent=35 // pred_fallthru
          _
      $region36: #{tpu_custom_call.1} parent=5 // pred_fallthru
        _
    $region6: #{tpu_custom_call.1} parent=1 // loop_footer
      %s15 = sadd.s32 1, %s11
    $region7: #{tpu_custom_call.1} parent=1 // loop_footer_branch
      %10 = sbr.rel target = $region3
    $region8: #{tpu_custom_call.1} parent=1 // loop_exit
      _
    %259 = vsyncpa [#allocation3], 1
    %s260 = scalar_lea.sflag [#allocation3], 1
    %261 = vsyncpa %s260, 1

</llo_original>
